<compile_context>
chip_gen: v6e
topology: v6e:2x2x1
jax: 0.10.0
libtpu: 0.0.40
codegen_flags: <defaults>
</compile_context>

<pallas_src>
import functools

import jax
import jax.numpy as jnp
from jax.experimental import pallas as pl
from jax.experimental.pallas import tpu as pltpu


def _round_up(v, m):
    return (v + m - 1) // m * m


def _gated_attn_kernel(x_ref, wab_ref, bab_ref, wc_ref, bc_ref, out_ref, *,
                       d_pad, n_classes):
    # In-kernel cast: x streams from HBM as f32, converted to compute dtype
    # right before the MXU (no separate HBM convert pass).
    x = x_ref[...].astype(wab_ref.dtype)                      # (TN, L)
    # Fused hidden projection: one MXU matmul against [Wa^T | Wb^T], f32 acc.
    ab = (jnp.dot(x, wab_ref[...], preferred_element_type=jnp.float32)
          + bab_ref[...])                                     # (TN, 2*d_pad) f32
    a = jnp.tanh(ab[:, :d_pad])                               # attention_a
    b = jax.nn.sigmoid(ab[:, d_pad:])                         # attention_b
    gated = (a * b).astype(wc_ref.dtype)                      # (TN, d_pad)
    # attention_c against a lane-padded (d_pad, c_pad) weight; keep the
    # padded result in-register and store only the real C columns.
    out = (jnp.dot(gated, wc_ref[...], preferred_element_type=jnp.float32)
           + bc_ref[...])                                     # (TN, c_pad) f32
    out_ref[...] = out[:, :n_classes].astype(out_ref.dtype)   # (TN, C)


def prepare_attn_net_gated_params(wa, ba, wb, bb, wc, bc,
                                  compute_dtype=jnp.bfloat16):
    """One-time parameter prep (transpose / fuse / pad / cast).

    wa, wb : (D, L) PyTorch-layout linear weights; ba, bb : (D,)
    wc : (C, D); bc : (C,)
    """
    D, L = wa.shape
    C = wc.shape[0]
    d_pad = _round_up(D, 128)                  # lane-aligned hidden width
    c_pad = _round_up(max(C, 1), 128)          # lane-dense MXU output width

    # Fuse the two hidden projections: [Wa^T | Wb^T] -> (L, 2*d_pad).
    wa_t = jnp.pad(wa.T, ((0, 0), (0, d_pad - D)))
    wb_t = jnp.pad(wb.T, ((0, 0), (0, d_pad - D)))
    w_ab = jnp.concatenate([wa_t, wb_t], axis=1).astype(compute_dtype)
    b_a = jnp.pad(ba, (0, d_pad - D))
    b_b = jnp.pad(bb, (0, d_pad - D))
    b_ab = jnp.concatenate([b_a, b_b]).reshape(1, 2 * d_pad).astype(jnp.float32)
    # Final projection: (d_pad, c_pad), zero rows for padded D (-> inert).
    wc_p = jnp.pad(wc.T, ((0, d_pad - D), (0, c_pad - C))).astype(compute_dtype)
    bc_p = jnp.pad(bc.reshape(1, C),
                   ((0, 0), (0, c_pad - C))).astype(jnp.float32)
    meta = dict(L=L, D=D, C=C, d_pad=d_pad, c_pad=c_pad,
                compute_dtype=compute_dtype)
    return (w_ab, b_ab, wc_p, bc_p), meta


def attn_net_gated_apply(x, params, meta, *, tile_n=1024):
    """Run the fused gated-attention head on prepared params."""
    w_ab, b_ab, wc_p, bc_p = params
    L, D, C = meta["L"], meta["D"], meta["C"]
    d_pad, c_pad = meta["d_pad"], meta["c_pad"]
    compute_dtype = meta["compute_dtype"]
    N = x.shape[0]
    assert x.shape[1] == L

    # --- row-tile size ----------------------------------------------------
    # Aim for >= ~8 grid steps (so both v7x TensorCores get several steps and
    # DMA/compute overlap is real), but never drop below 128 rows per tile
    # unless N itself is smaller; cap at tile_n.
    min_steps = 8
    tn = min(int(tile_n), max(_round_up(pl.cdiv(N, min_steps), 8), 128))
    tn = max(8, min(tn, _round_up(N, 8)))
    grid = (pl.cdiv(N, tn),)

    # --- VMEM budget (generation-aware cap) --------------------------------
    itemsize = jnp.dtype(compute_dtype).itemsize
    est = (2 * tn * L * 4                              # x double buffer (f32)
           + 2 * tn * max(C, 1) * 4                    # out double buffer
           + (L * 2 * d_pad + d_pad * c_pad) * itemsize  # resident weights
           + (2 * d_pad + c_pad) * 4                   # biases
           + tn * (3 * d_pad + c_pad) * 4)             # f32 intermediates
    try:
        cap = int(getattr(pltpu.get_tpu_info(), "vmem_capacity_bytes",
                          64 * 1024 * 1024))
    except Exception:
        cap = 64 * 1024 * 1024
    vmem_cap = max(int(0.75 * cap), 32 * 1024 * 1024)  # 48 MiB on v7x, 96 MiB on v5e/v6e
    vmem_limit = int(min(max(2 * est, 32 * 1024 * 1024), vmem_cap))

    cost = pl.CostEstimate(
        flops=int(2 * N * L * (2 * d_pad) + 2 * N * d_pad * c_pad),
        transcendentals=int(2 * N * d_pad),
        bytes_accessed=int(N * L * 4 + N * C * 4
                           + (L * 2 * d_pad + d_pad * c_pad) * itemsize
                           + (2 * d_pad + c_pad) * 4),
    )

    A = pl.pallas_call(
        functools.partial(_gated_attn_kernel, d_pad=d_pad, n_classes=C),
        out_shape=jax.ShapeDtypeStruct((N, C), jnp.float32),
        grid_spec=pltpu.PrefetchScalarGridSpec(
            num_scalar_prefetch=0,
            grid=grid,
            in_specs=[
                pl.BlockSpec((tn, L), lambda i: (i, 0)),          # x (row-tiled, f32)
                pl.BlockSpec((L, 2 * d_pad), lambda i: (0, 0)),   # [Wa^T | Wb^T]
                pl.BlockSpec((1, 2 * d_pad), lambda i: (0, 0)),   # [ba | bb]
                pl.BlockSpec((d_pad, c_pad), lambda i: (0, 0)),   # Wc^T (padded)
                pl.BlockSpec((1, c_pad), lambda i: (0, 0)),       # bc (padded)
            ],
            out_specs=pl.BlockSpec((tn, C), lambda i: (i, 0)),    # narrow (N, C)
        ),
        compiler_params=pltpu.CompilerParams(
            dimension_semantics=("parallel",),
            vmem_limit_bytes=vmem_limit),
        cost_estimate=cost,
    )(x, w_ab, b_ab, wc_p, bc_p)

    # Module returns (A, x); x passthrough needs no kernel work.
    return A, x


def attn_net_gated(x, wa, ba, wb, bb, wc, bc, *, tile_n=1024,
                   compute_dtype=jnp.bfloat16):
    """Convenience wrapper: prep params + apply (prefer caching prep)."""
    params, meta = prepare_attn_net_gated_params(
        wa, ba, wb, bb, wc, bc, compute_dtype=compute_dtype)
    return attn_net_gated_apply(x, params, meta, tile_n=tile_n)


def _reference(x, wa, ba, wb, bb, wc, bc):
    dot = functools.partial(jnp.dot, precision=jax.lax.Precision.HIGHEST)
    a = jnp.tanh(dot(x, wa.T) + ba)
    b = jax.nn.sigmoid(dot(x, wb.T) + bb)
    return dot(a * b, wc.T) + bc


if __name__ == "__main__":
    # Small shapes consistent with the module (L input features, D hidden,
    # C = n_classes, N instances).
    N, L, D, C = 512, 256, 128, 1

    key = jax.random.PRNGKey(0)
    kx, ka, kba, kb, kbb, kc, kbc = jax.random.split(key, 7)

    x = jax.random.normal(kx, (N, L), dtype=jnp.float32)
    # PyTorch Linear layout: weight (out, in), bias (out,).
    wa = jax.random.normal(ka, (D, L), dtype=jnp.float32) * 0.1
    ba = jax.random.normal(kba, (D,), dtype=jnp.float32) * 0.1
    wb = jax.random.normal(kb, (D, L), dtype=jnp.float32) * 0.1
    bb = jax.random.normal(kbb, (D,), dtype=jnp.float32) * 0.1
    wc = jax.random.normal(kc, (C, D), dtype=jnp.float32) * 0.1
    bc = jax.random.normal(kbc, (C,), dtype=jnp.float32) * 0.1

    # Fast path: prep once, apply (bf16 weights/compute, f32 accumulation).
    params_bf16, meta_bf16 = prepare_attn_net_gated_params(
        wa, ba, wb, bb, wc, bc, compute_dtype=jnp.bfloat16)
    A_bf16, x_out = attn_net_gated_apply(x, params_bf16, meta_bf16)

    # f32 path for a tighter numerical check.
    A_f32, _ = attn_net_gated(x, wa, ba, wb, bb, wc, bc,
                              compute_dtype=jnp.float32)
    jax.block_until_ready((A_bf16, A_f32, x_out))

    A_ref = _reference(x, wa, ba, wb, bb, wc, bc)
    assert A_bf16.shape == (N, C) and A_f32.shape == (N, C)
    assert x_out.shape == (N, L)
    assert jnp.allclose(A_f32, A_ref, atol=5e-3, rtol=5e-3), "f32 mismatch"
    assert jnp.allclose(A_bf16, A_ref, atol=1e-1, rtol=1e-1), "bf16 mismatch"
    assert jnp.array_equal(x_out, x), "x passthrough mismatch"

    print("KERNEL_OK")
</pallas_src>

<mosaic_0001>
module attributes {stable_mosaic.version = 11 : i64} {
  func.func @_gated_attn_kernel(%arg0: i32, %arg1: memref<128x256xf32, #tpu.memory_space<vmem>>, %arg2: memref<256x256xbf16, #tpu.memory_space<vmem>>, %arg3: memref<1x256xf32, #tpu.memory_space<vmem>>, %arg4: memref<128x128xbf16, #tpu.memory_space<vmem>>, %arg5: memref<1x128xf32, #tpu.memory_space<vmem>>, %arg6: memref<128x1xf32, #tpu.memory_space<vmem>>) attributes {dimension_semantics = [#tpu.dimension_semantics<parallel>], iteration_bounds = array<i64: 4>, scalar_prefetch = 0 : i64, scratch_operands = 0 : i64, tpu.core_type = #tpu.core_type<tc>, window_params = [{transform_indices = @transform_0, window_bounds = array<i64: 128, 256>}, {pipeline_mode = #tpu.pipeline_mode<synchronous>, transform_indices = @transform_1, window_bounds = array<i64: 256, 256>}, {pipeline_mode = #tpu.pipeline_mode<synchronous>, transform_indices = @transform_2, window_bounds = array<i64: 1, 256>}, {pipeline_mode = #tpu.pipeline_mode<synchronous>, transform_indices = @transform_3, window_bounds = array<i64: 128, 128>}, {pipeline_mode = #tpu.pipeline_mode<synchronous>, transform_indices = @transform_4, window_bounds = array<i64: 1, 128>}, {transform_indices = @transform_5, window_bounds = array<i64: 128, 1>}]} {
    %c0 = arith.constant 0 : index
    %c0_0 = arith.constant 0 : index
    %0 = vector.load %arg1[%c0, %c0_0] : memref<128x256xf32, #tpu.memory_space<vmem>>, vector<128x256xf32>
    %1 = arith.truncf %0 : vector<128x256xf32> to vector<128x256xbf16>
    %c0_1 = arith.constant 0 : index
    %c0_2 = arith.constant 0 : index
    %2 = vector.load %arg2[%c0_1, %c0_2] : memref<256x256xbf16, #tpu.memory_space<vmem>>, vector<256x256xbf16>
    %cst = arith.constant dense<0.000000e+00> : vector<128x256xf32>
    %3 = tpu.matmul %1, %2, %cst {dimension_numbers = #tpu.dot_dimension_numbers<[1], [0], [0], [1], [0, 0, 1, 1], [], []>} : vector<128x256xbf16>, vector<256x256xbf16>, vector<128x256xf32> -> vector<128x256xf32>
    %c0_3 = arith.constant 0 : index
    %c0_4 = arith.constant 0 : index
    %4 = vector.load %arg3[%c0_3, %c0_4] : memref<1x256xf32, #tpu.memory_space<vmem>>, vector<1x256xf32>
    %5 = vector.broadcast %4 : vector<1x256xf32> to vector<128x256xf32>
    %6 = arith.addf %3, %5 : vector<128x256xf32>
    %7 = vector.extract_strided_slice %6 {offsets = [0, 0], sizes = [128, 128], strides = [1, 1]} : vector<128x256xf32> to vector<128x128xf32>
    %8 = math.tanh %7 : vector<128x128xf32>
    %9 = vector.extract_strided_slice %6 {offsets = [0, 128], sizes = [128, 128], strides = [1, 1]} : vector<128x256xf32> to vector<128x128xf32>
    %10 = arith.negf %9 : vector<128x128xf32>
    %11 = math.exp %10 : vector<128x128xf32>
    %cst_5 = arith.constant 1.000000e+00 : f32
    %12 = vector.broadcast %cst_5 : f32 to vector<128x128xf32>
    %13 = arith.addf %12, %11 : vector<128x128xf32>
    %14 = arith.divf %12, %13 : vector<128x128xf32>
    %15 = arith.mulf %8, %14 : vector<128x128xf32>
    %16 = arith.truncf %15 : vector<128x128xf32> to vector<128x128xbf16>
    %c0_6 = arith.constant 0 : index
    %c0_7 = arith.constant 0 : index
    %17 = vector.load %arg4[%c0_6, %c0_7] : memref<128x128xbf16, #tpu.memory_space<vmem>>, vector<128x128xbf16>
    %cst_8 = arith.constant dense<0.000000e+00> : vector<128x128xf32>
    %18 = tpu.matmul %16, %17, %cst_8 {dimension_numbers = #tpu.dot_dimension_numbers<[1], [0], [0], [1], [0, 0, 1, 1], [], []>} : vector<128x128xbf16>, vector<128x128xbf16>, vector<128x128xf32> -> vector<128x128xf32>
    %c0_9 = arith.constant 0 : index
    %c0_10 = arith.constant 0 : index
    %19 = vector.load %arg5[%c0_9, %c0_10] : memref<1x128xf32, #tpu.memory_space<vmem>>, vector<1x128xf32>
    %20 = vector.broadcast %19 : vector<1x128xf32> to vector<128x128xf32>
    %21 = arith.addf %18, %20 : vector<128x128xf32>
    %22 = vector.extract_strided_slice %21 {offsets = [0, 0], sizes = [128, 1], strides = [1, 1]} : vector<128x128xf32> to vector<128x1xf32>
    %c0_11 = arith.constant 0 : index
    %c0_12 = arith.constant 0 : index
    %23 = vector.load %arg6[%c0_11, %c0_12] : memref<128x1xf32, #tpu.memory_space<vmem>>, vector<128x1xf32>
    tpu.vector_store %arg6[%c0_11, %c0_12], %22 {strides = array<i32>} : memref<128x1xf32, #tpu.memory_space<vmem>>, vector<128x1xf32>,
    return
  }
  func.func @transform_0(%arg0: i32) -> (i32, i32) {
    %c0_i32 = arith.constant 0 : i32
    %c0_i32_0 = arith.constant 0 : i32
    return %arg0, %c0_i32 : i32, i32
  }
  func.func @transform_1(%arg0: i32) -> (i32, i32) {
    %c0_i32 = arith.constant 0 : i32
    %c0_i32_0 = arith.constant 0 : i32
    %c0_i32_1 = arith.constant 0 : i32
    return %c0_i32, %c0_i32_0 : i32, i32
  }
  func.func @transform_2(%arg0: i32) -> (i32, i32) {
    %c0_i32 = arith.constant 0 : i32
    %c0_i32_0 = arith.constant 0 : i32
    %c0_i32_1 = arith.constant 0 : i32
    return %c0_i32, %c0_i32_0 : i32, i32
  }
  func.func @transform_3(%arg0: i32) -> (i32, i32) {
    %c0_i32 = arith.constant 0 : i32
    %c0_i32_0 = arith.constant 0 : i32
    %c0_i32_1 = arith.constant 0 : i32
    return %c0_i32, %c0_i32_0 : i32, i32
  }
  func.func @transform_4(%arg0: i32) -> (i32, i32) {
    %c0_i32 = arith.constant 0 : i32
    %c0_i32_0 = arith.constant 0 : i32
    %c0_i32_1 = arith.constant 0 : i32
    return %c0_i32, %c0_i32_0 : i32, i32
  }
  func.func @transform_5(%arg0: i32) -> (i32, i32) {
    %c0_i32 = arith.constant 0 : i32
    %c0_i32_0 = arith.constant 0 : i32
    return %arg0, %c0_i32 : i32, i32
  }
}

</mosaic_0001>

<llo_original>
// kernel: tpu_custom_call.1
$region0: #{tpu_custom_call.1}
  #allocation0 [shape = 'u32[]', space=smem, size = 0x4, offset = 0x4, fixed_abs, tag = 'smem constant byte address 0x4 - core index']
  #allocation1 [shape = 'u32[144,128]{1,0:T(1,128)}', space=vmem, size = 0x12000, scoped, tag = 'internal scratch']
  %s0 = inlined_call_operand.hbm [shape: f32[512,256], index: 0, kind: input, shape index: {}]
  %s1 = inlined_call_operand.hbm [shape: bf16[256,256], index: 1, kind: input, shape index: {}]
  %s2 = inlined_call_operand.vmem [shape: f32[1,256], index: 2, kind: input, shape index: {}]
  %s3 = inlined_call_operand.hbm [shape: bf16[128,128], index: 3, kind: input, shape index: {}]
  %s4 = inlined_call_operand.vmem [shape: f32[1,128], index: 4, kind: input, shape index: {}]
  %s5 = inlined_call_operand.vmem [shape: f32[512,1], index: 5, kind: output, shape index: {}]
  %s6 = sld [smem:[#allocation0]]
  $region65: #{tpu_custom_call.1} parent=0
    _
  %s8 = ssub.s32 1, %s6
  %s9 = scalar_select 0, %s8, %s6
  $region1: #{tpu_custom_call.1} parent=0
    #allocation2 [shape = 'u8[262144]{0}', space=vmem, size = 0x40000, scoped, tag = 'input window, operand 0']
    #allocation3 [shape = 's32[2]{0}', space=sflag, size = 0x8, scoped, tag = 'scoped memory for tpu_custom_call.1']
    #allocation4 [shape = 'u8[131072]{0}', space=vmem, size = 0x20000, scoped, tag = 'input window, operand 1, single buffered']
    #allocation5 [shape = 's32[1]{0}', space=sflag, size = 0x4, scoped, tag = 'scoped memory for tpu_custom_call.1']
    #allocation6 [shape = 'u8[32768]{0}', space=vmem, size = 0x8000, scoped, tag = 'input window, operand 3, single buffered']
    %10 = vsyncpa [#allocation3], 0
    %s11 = scalar_lea.sflag [#allocation3], 1
    %12 = vsyncpa %s11, 0
    %13 = vsyncpa [#allocation5], 0
    loop: start=0, step=1, limit=6
    $region2: #{tpu_custom_call.1} parent=1 // loop_pre_header
      _
    $region3: #{tpu_custom_call.1} parent=1 // loop_header
      %s15 = sphi 0, %s19
      %p16 = scmp.ge.s32.totalorder %s15, 6
      %s25 = sphi 0, %s27
      %s28 = sphi 0, %s25
      %s29 = sphi 0, %s28
      %s45 = sphi 0, %s29
      %s49 = sphi 0, %s49
      %s51 = sphi 0, %s49
      %s52 = sphi 0, %s51
      %s66 = sphi 0, %s52
      %s70 = sphi 0, %s70
      %s72 = sphi 0, %s70
      %s73 = sphi 0, %s72
      %s87 = sphi 0, %s73
      %s91 = sphi 0, %s91
      %s93 = sphi 0, %s91
      %s94 = sphi 0, %s93
      %s108 = sphi 0, %s94
      %s112 = sphi 0, %s112
      %s114 = sphi 0, %s112
      %s115 = sphi 0, %s114
      %s129 = sphi 0, %s115
      %s135 = sphi 0, %s137
      %s138 = sphi 0, %s135
      %s139 = sphi 0, %s138
      %s155 = sphi 0, %s139
    $region4: #{tpu_custom_call.1} parent=1 // loop_header_branch
      %18 = sbr.rel (%p16) target = $region8
    $region5: #{tpu_custom_call.1} parent=1 // loop_body
      %s20 = ssub.s32 %s15, 1
      %s21 = ssub.s32 %s15, 2
      %s22 = sadd.s32 %s15, 1
      %s23 = ssub.s32 %s15, %s22
      %p24 = scmp.eq.s32.totalorder %s23, 0
      %s26 = sadd.s32 %s25, 1
      %s27 = scalar_select %p24, %s25, %s26
      %p30 = pneg %p24
      %p31 = scmp.eq.s32.totalorder %s15, 3
      %p32 = por %p30, %p31
      %p33 = scmp.ne.s32.totalorder %s25, %s28
      %p34 = scmp.eq.s32.totalorder %s15, 0
      %p35 = por %p33, %p34
      %p36 = scmp.ne.s32.totalorder %s25, %s28
      %p37 = scmp.eq.s32.totalorder %s20, 3
      %p38 = por %p36, %p37
      %p39 = scmp.ne.s32.totalorder %s28, %s29
      %p40 = scmp.eq.s32.totalorder %s20, 0
      %p41 = por %p39, %p40
      %p42 = scmp.ne.s32.totalorder %s28, %s29
      %p43 = scmp.eq.s32.totalorder %s21, 3
      %p44 = por %p42, %p43
      %p46 = scmp.ne.s32.totalorder %s29, %s45
      %p47 = scmp.eq.s32.totalorder %s21, 0
      %p48 = por %p46, %p47
      %s50 = sadd.s32 %s49, 1
      %p53 = scmp.eq.s32.totalorder %s15, 3
      %p54 = scmp.ne.s32.totalorder %s49, %s51
      %p55 = scmp.eq.s32.totalorder %s15, 0
      %p56 = por %p54, %p55
      %p57 = scmp.ne.s32.totalorder %s49, %s51
      %p58 = scmp.eq.s32.totalorder %s20, 3
      %p59 = por %p57, %p58
      %p60 = scmp.ne.s32.totalorder %s51, %s52
      %p61 = scmp.eq.s32.totalorder %s20, 0
      %p62 = por %p60, %p61
      %p63 = scmp.ne.s32.totalorder %s51, %s52
      %p64 = scmp.eq.s32.totalorder %s21, 3
      %p65 = por %p63, %p64
      %p67 = scmp.ne.s32.totalorder %s52, %s66
      %p68 = scmp.eq.s32.totalorder %s21, 0
      %p69 = por %p67, %p68
      %s71 = sadd.s32 %s70, 1
      %p74 = scmp.eq.s32.totalorder %s15, 3
      %p75 = scmp.ne.s32.totalorder %s70, %s72
      %p76 = scmp.eq.s32.totalorder %s15, 0
      %p77 = por %p75, %p76
      %p78 = scmp.ne.s32.totalorder %s70, %s72
      %p79 = scmp.eq.s32.totalorder %s20, 3
      %p80 = por %p78, %p79
      %p81 = scmp.ne.s32.totalorder %s72, %s73
      %p82 = scmp.eq.s32.totalorder %s20, 0
      %p83 = por %p81, %p82
      %p84 = scmp.ne.s32.totalorder %s72, %s73
      %p85 = scmp.eq.s32.totalorder %s21, 3
      %p86 = por %p84, %p85
      %p88 = scmp.ne.s32.totalorder %s73, %s87
      %p89 = scmp.eq.s32.totalorder %s21, 0
      %p90 = por %p88, %p89
      %s92 = sadd.s32 %s91, 1
      %p95 = scmp.eq.s32.totalorder %s15, 3
      %p96 = scmp.ne.s32.totalorder %s91, %s93
      %p97 = scmp.eq.s32.totalorder %s15, 0
      %p98 = por %p96, %p97
      %p99 = scmp.ne.s32.totalorder %s91, %s93
      %p100 = scmp.eq.s32.totalorder %s20, 3
      %p101 = por %p99, %p100
      %p102 = scmp.ne.s32.totalorder %s93, %s94
      %p103 = scmp.eq.s32.totalorder %s20, 0
      %p104 = por %p102, %p103
      %p105 = scmp.ne.s32.totalorder %s93, %s94
      %p106 = scmp.eq.s32.totalorder %s21, 3
      %p107 = por %p105, %p106
      %p109 = scmp.ne.s32.totalorder %s94, %s108
      %p110 = scmp.eq.s32.totalorder %s21, 0
      %p111 = por %p109, %p110
      %s113 = sadd.s32 %s112, 1
      %p116 = scmp.eq.s32.totalorder %s15, 3
      %p117 = scmp.ne.s32.totalorder %s112, %s114
      %p118 = scmp.eq.s32.totalorder %s15, 0
      %p119 = por %p117, %p118
      %p120 = scmp.ne.s32.totalorder %s112, %s114
      %p121 = scmp.eq.s32.totalorder %s20, 3
      %p122 = por %p120, %p121
      %p123 = scmp.ne.s32.totalorder %s114, %s115
      %p124 = scmp.eq.s32.totalorder %s20, 0
      %p125 = por %p123, %p124
      %p126 = scmp.ne.s32.totalorder %s114, %s115
      %p127 = scmp.eq.s32.totalorder %s21, 3
      %p128 = por %p126, %p127
      %p130 = scmp.ne.s32.totalorder %s115, %s129
      %p131 = scmp.eq.s32.totalorder %s21, 0
      %p132 = por %p130, %p131
      %s133 = ssub.s32 %s15, %s22
      %p134 = scmp.eq.s32.totalorder %s133, 0
      %s136 = sadd.s32 %s135, 1
      %s137 = scalar_select %p134, %s135, %s136
      %p140 = pneg %p134
      %p141 = scmp.eq.s32.totalorder %s15, 3
      %p142 = por %p140, %p141
      %p143 = scmp.ne.s32.totalorder %s135, %s138
      %p144 = scmp.eq.s32.totalorder %s15, 0
      %p145 = por %p143, %p144
      %p146 = scmp.ne.s32.totalorder %s135, %s138
      %p147 = scmp.eq.s32.totalorder %s20, 3
      %p148 = por %p146, %p147
      %p149 = scmp.ne.s32.totalorder %s138, %s139
      %p150 = scmp.eq.s32.totalorder %s20, 0
      %p151 = por %p149, %p150
      %p152 = scmp.ne.s32.totalorder %s138, %s139
      %p153 = scmp.eq.s32.totalorder %s21, 3
      %p154 = por %p152, %p153
      %p156 = scmp.ne.s32.totalorder %s139, %s155
      %p157 = scmp.eq.s32.totalorder %s21, 0
      %p158 = por %p156, %p157
      %p159 = scmp.le.s32.totalorder 1, %s15
      %p160 = scmp.lt.s32.totalorder %s15, 5
      %p161 = pnand %p159, %p160
      %p162 = pneg %p161
      // Predicated region
      $region9: #{tpu_custom_call.1} parent=5 // pred_check
        _
      $region10: #{tpu_custom_call.1} parent=5 // pred_check_branch
        %164 = sbr.rel (%p161) target = $region12
      $region11: #{tpu_custom_call.1} parent=5 // pred_region
        %s165 = ssub.s32 %s15, 1
        // Predicated region
        $region13: #{tpu_custom_call.1} parent=11 // pred_check
          %p166 = pneg %p62
        $region14: #{tpu_custom_call.1} parent=11 // pred_check_branch
          %168 = sbr.rel (%p166) target = $region16
        $region15: #{tpu_custom_call.1} parent=11 // pred_region
          %s170 = ssub.s32 4096, 4096
          %171 = vsyncadd [#allocation5], %s170
          %s172 = sshll.u32 [#allocation4], 4
          %s173 = int_to_ptr.vmem [resolvable:$true] %s172
          %178 = dma.hbm_to_vmem [thread:$0]  %s1, 4096, %s173, [#allocation5], 128, 128, 8
        $region16: #{tpu_custom_call.1} parent=11 // pred_fallthru
          _
        // Predicated region
        $region17: #{tpu_custom_call.1} parent=11 // pred_check
          %p179 = pneg %p83
        $region18: #{tpu_custom_call.1} parent=11 // pred_check_branch
          %181 = sbr.rel (%p179) target = $region20
        $region19: #{tpu_custom_call.1} parent=11 // pred_region
          _
        $region20: #{tpu_custom_call.1} parent=11 // pred_fallthru
          _
        // Predicated region
        $region21: #{tpu_custom_call.1} parent=11 // pred_check
          %p182 = pneg %p104
        $region22: #{tpu_custom_call.1} parent=11 // pred_check_branch
          %184 = sbr.rel (%p182) target = $region24
        $region23: #{tpu_custom_call.1} parent=11 // pred_region
          %s186 = ssub.s32 1024, 1024
          %187 = vsyncadd [#allocation5], %s186
          %s188 = sshll.u32 [#allocation6], 4
          %s189 = int_to_ptr.vmem [resolvable:$true] %s188
          %194 = dma.hbm_to_vmem [thread:$0]  %s3, 1024, %s189, [#allocation5], 64, 64, 4
        $region24: #{tpu_custom_call.1} parent=11 // pred_fallthru
          _
        // Predicated region
        $region25: #{tpu_custom_call.1} parent=11 // pred_check
          %p195 = pneg %p125
        $region26: #{tpu_custom_call.1} parent=11 // pred_check_branch
          %197 = sbr.rel (%p195) target = $region28
        $region27: #{tpu_custom_call.1} parent=11 // pred_region
          _
        $region28: #{tpu_custom_call.1} parent=11 // pred_fallthru
          _
      $region12: #{tpu_custom_call.1} parent=5 // pred_fallthru
        _
      %p198 = scmp.lt.s32.totalorder %s15, 4
      // Predicated region
      $region29: #{tpu_custom_call.1} parent=5 // pred_check
        %p199 = pneg %p198
      $region30: #{tpu_custom_call.1} parent=5 // pred_check_branch
        %201 = sbr.rel (%p199) target = $region32
      $region31: #{tpu_custom_call.1} parent=5 // pred_region
        // Predicated region
        $region33: #{tpu_custom_call.1} parent=31 // pred_check
          %p202 = pneg %p35
        $region34: #{tpu_custom_call.1} parent=31 // pred_check_branch
          %204 = sbr.rel (%p202) target = $region36
        $region35: #{tpu_custom_call.1} parent=31 // pred_region
          %s205 = sand.u32 %s25, 1
          %s206 = scalar_lea.sflag [#allocation3], %s205
          %s207 = sand.u32 %s25, 1
          %s208 = smul.addr %s207, 256
          %s209 = scalar_lea.vmem [#allocation2], %s208
          %s210 = smul.u32 16, %s15
          %s212 = ssub.s32 4096, 4096
          %213 = vsyncadd %s206, %s212
          %s214 = smul.addr %s210, 2
          %s215 = smul.addr %s214, 128
          %s216 = scalar_lea.hbm %s0, %s215
          %s217 = sshll.u32 %s209, 4
          %s218 = int_to_ptr.vmem [resolvable:$true] %s217
          %223 = dma.hbm_to_vmem [thread:$0]  %s216, 4096, %s218, %s206, 256, 256, 16
        $region36: #{tpu_custom_call.1} parent=31 // pred_fallthru
          _
      $region32: #{tpu_custom_call.1} parent=5 // pred_fallthru
        _
      %p224 = scmp.le.s32.totalorder 1, %s15
      %p225 = scmp.lt.s32.totalorder %s15, 5
      %p226 = pnand %p224, %p225
      %p227 = pneg %p226
      // Predicated region
      $region37: #{tpu_custom_call.1} parent=5 // pred_check
        _
      $region38: #{tpu_custom_call.1} parent=5 // pred_check_branch
        %229 = sbr.rel (%p226) target = $region40
      $region39: #{tpu_custom_call.1} parent=5 // pred_region
        %s230 = ssub.s32 %s15, 1
        %s231 = sand.u32 %s28, 1
        %s232 = scalar_lea.sflag [#allocation3], %s231
        %s233 = sand.u32 %s28, 1
        %s234 = smul.addr %s233, 256
        %s235 = scalar_lea.vmem [#allocation2], %s234
        // Predicated region
        $region41: #{tpu_custom_call.1} parent=39 // pred_check
          %p236 = pneg %p41
        $region42: #{tpu_custom_call.1} parent=39 // pred_check_branch
          %238 = sbr.rel (%p236) target = $region44
        $region43: #{tpu_custom_call.1} parent=39 // pred_region
          %239 = dma.done %s232, 4096
        $region44: #{tpu_custom_call.1} parent=39 // pred_fallthru
          _
        // Predicated region
        $region45: #{tpu_custom_call.1} parent=39 // pred_check
          %p240 = pneg %p62
        $region46: #{tpu_custom_call.1} parent=39 // pred_check_branch
          %242 = sbr.rel (%p240) target = $region48
        $region47: #{tpu_custom_call.1} parent=39 // pred_region
          %243 = dma.done [#allocation5], 4096
        $region48: #{tpu_custom_call.1} parent=39 // pred_fallthru
          _
        // Predicated region
        $region49: #{tpu_custom_call.1} parent=39 // pred_check
          %p244 = pneg %p104
        $region50: #{tpu_custom_call.1} parent=39 // pred_check_branch
          %246 = sbr.rel (%p244) target = $region52
        $region51: #{tpu_custom_call.1} parent=39 // pred_region
          %247 = dma.done [#allocation5], 1024
        $region52: #{tpu_custom_call.1} parent=39 // pred_fallthru
          _
        %s248 = sand.u32 %s28, 1
        %s249 = scalar_lea.sflag [#allocation3], %s248
        %s250 = sand.u32 %s28, 1
        %s251 = smul.addr %s250, 256
        %s252 = scalar_lea.vmem [#allocation2], %s251
        %p253 = pneg %p41
        %p254 = pneg %p38
        %p255 = pneg %p62
        %p256 = pneg %p59
        %p257 = pneg %p83
        %p258 = pneg %p80
        %p259 = pneg %p104
        %p260 = pneg %p101
        %p261 = pneg %p125
        %p262 = pneg %p122
        %p263 = pneg %p151
        %p264 = pneg %p148
        %s265 = smul.u32 16, %s20
        %p266 = scmp.lt.s32.totalorder %s265, 63
        %s267 = scalar_select %p266, %s265, 63
        %s268 = smul.addr %s267, 8
        %s269 = scalar_lea.vmem %s5, %s268
        %s270 = smul.u32 16, %s20
        %s271 = smul.u32 16, %s20
        %p272 = scmp.lt.s32.totalorder %s271, 63
        %s273 = scalar_select %p272, %s271, 63
        %s274 = smul.addr %s273, 8
        %s275 = scalar_lea.vmem %s5, %s274
        %s276 = smul.u32 16, %s20
        %v278 = vld [vmem:[%s235] sm:$0xff]
        %v279 = vld [vmem:[%s235 + $0x8] sm:$0xff]
        %v280 = vld [vmem:[%s235 + $0x10] sm:$0xff]
        %v281 = vld [vmem:[%s235 + $0x18] sm:$0xff]
        %v282 = vld [vmem:[%s235 + $0x20] sm:$0xff]
        %v283 = vld [vmem:[%s235 + $0x28] sm:$0xff]
        %v284 = vld [vmem:[%s235 + $0x30] sm:$0xff]
        %v285 = vld [vmem:[%s235 + $0x38] sm:$0xff]
        %v286 = vld [vmem:[%s235 + $0x40] sm:$0xff]
        %v287 = vld [vmem:[%s235 + $0x48] sm:$0xff]
        %v288 = vld [vmem:[%s235 + $0x50] sm:$0xff]
        %v289 = vld [vmem:[%s235 + $0x58] sm:$0xff]
        %v290 = vld [vmem:[%s235 + $0x60] sm:$0xff]
        %v291 = vld [vmem:[%s235 + $0x68] sm:$0xff]
        %v292 = vld [vmem:[%s235 + $0x70] sm:$0xff]
        %v293 = vld [vmem:[%s235 + $0x78] sm:$0xff]
        %v294 = vld [vmem:[%s235 + $0x80] sm:$0xff]
        %v295 = vld [vmem:[%s235 + $0x88] sm:$0xff]
        %v296 = vld [vmem:[%s235 + $0x90] sm:$0xff]
        %v297 = vld [vmem:[%s235 + $0x98] sm:$0xff]
        %v298 = vld [vmem:[%s235 + $0xa0] sm:$0xff]
        %v299 = vld [vmem:[%s235 + $0xa8] sm:$0xff]
        %v300 = vld [vmem:[%s235 + $0xb0] sm:$0xff]
        %v301 = vld [vmem:[%s235 + $0xb8] sm:$0xff]
        %v302 = vld [vmem:[%s235 + $0xc0] sm:$0xff]
        %v303 = vld [vmem:[%s235 + $0xc8] sm:$0xff]
        %v304 = vld [vmem:[%s235 + $0xd0] sm:$0xff]
        %v305 = vld [vmem:[%s235 + $0xd8] sm:$0xff]
        %v306 = vld [vmem:[%s235 + $0xe0] sm:$0xff]
        %v307 = vld [vmem:[%s235 + $0xe8] sm:$0xff]
        %v308 = vld [vmem:[%s235 + $0xf0] sm:$0xff]
        %v309 = vld [vmem:[%s235 + $0xf8] sm:$0xff]
        %v310 = vpack.c.bf16 %v280, %v278
        %v311 = vpack.c.bf16 %v281, %v279
        %v312 = vpack.c.bf16 %v284, %v282
        %v313 = vpack.c.bf16 %v285, %v283
        %v314 = vpack.c.bf16 %v288, %v286
        %v315 = vpack.c.bf16 %v289, %v287
        %v316 = vpack.c.bf16 %v292, %v290
        %v317 = vpack.c.bf16 %v293, %v291
        %v318 = vpack.c.bf16 %v296, %v294
        %v319 = vpack.c.bf16 %v297, %v295
        %v320 = vpack.c.bf16 %v300, %v298
        %v321 = vpack.c.bf16 %v301, %v299
        %v322 = vpack.c.bf16 %v304, %v302
        %v323 = vpack.c.bf16 %v305, %v303
        %v324 = vpack.c.bf16 %v308, %v306
        %v325 = vpack.c.bf16 %v309, %v307
        %v326 = vld [vmem:[#allocation4] sm:$0xff]
        %v327 = vld [vmem:[#allocation4 + $0x8] sm:$0xff]
        %v328 = vld [vmem:[#allocation4 + $0x10] sm:$0xff]
        %v329 = vld [vmem:[#allocation4 + $0x18] sm:$0xff]
        %v330 = vld [vmem:[#allocation4 + $0x20] sm:$0xff]
        %v331 = vld [vmem:[#allocation4 + $0x28] sm:$0xff]
        %v332 = vld [vmem:[#allocation4 + $0x30] sm:$0xff]
        %v333 = vld [vmem:[#allocation4 + $0x38] sm:$0xff]
        %v334 = vld [vmem:[#allocation4 + $0x40] sm:$0xff]
        %v335 = vld [vmem:[#allocation4 + $0x48] sm:$0xff]
        %v336 = vld [vmem:[#allocation4 + $0x50] sm:$0xff]
        %v337 = vld [vmem:[#allocation4 + $0x58] sm:$0xff]
        %v338 = vld [vmem:[#allocation4 + $0x60] sm:$0xff]
        %v339 = vld [vmem:[#allocation4 + $0x68] sm:$0xff]
        %v340 = vld [vmem:[#allocation4 + $0x70] sm:$0xff]
        %v341 = vld [vmem:[#allocation4 + $0x78] sm:$0xff]
        %v342 = vld [vmem:[#allocation4 + $0x80] sm:$0xff]
        %v343 = vld [vmem:[#allocation4 + $0x88] sm:$0xff]
        %v344 = vld [vmem:[#allocation4 + $0x90] sm:$0xff]
        %v345 = vld [vmem:[#allocation4 + $0x98] sm:$0xff]
        %v346 = vld [vmem:[#allocation4 + $0xa0] sm:$0xff]
        %v347 = vld [vmem:[#allocation4 + $0xa8] sm:$0xff]
        %v348 = vld [vmem:[#allocation4 + $0xb0] sm:$0xff]
        %v349 = vld [vmem:[#allocation4 + $0xb8] sm:$0xff]
        %v350 = vld [vmem:[#allocation4 + $0xc0] sm:$0xff]
        %v351 = vld [vmem:[#allocation4 + $0xc8] sm:$0xff]
        %v352 = vld [vmem:[#allocation4 + $0xd0] sm:$0xff]
        %v353 = vld [vmem:[#allocation4 + $0xd8] sm:$0xff]
        %v354 = vld [vmem:[#allocation4 + $0xe0] sm:$0xff]
        %v355 = vld [vmem:[#allocation4 + $0xe8] sm:$0xff]
        %v356 = vld [vmem:[#allocation4 + $0xf0] sm:$0xff]
        %v357 = vld [vmem:[#allocation4 + $0xf8] sm:$0xff]
        %v358 = vld [vmem:[%s2] sm:$0x3]
        %v360 = vlaneseq
        %v361 = vshrl.u32 %v360, 7
        %v362 = vsub.s32 0, %v361
        %v363 = vrot.slane %v358, %v362
        %v364 = vlaneseq
        %v365 = vshrl.u32 %v364, 7
        %v366 = vsub.s32 1, %v365
        %v367 = vrot.slane %v358, %v366
        %v402 = vunpack.c.l.b16 %v326
        %v403 = vunpack.c.h.b16 %v326
        %v404 = vunpack.c.l.b16 %v327
        %v405 = vunpack.c.h.b16 %v327
        %v406 = vunpack.c.l.b16 %v328
        %v407 = vunpack.c.h.b16 %v328
        %v408 = vunpack.c.l.b16 %v329
        %v409 = vunpack.c.h.b16 %v329
        %v410 = vunpack.c.l.b16 %v330
        %v411 = vunpack.c.h.b16 %v330
        %v412 = vunpack.c.l.b16 %v331
        %v413 = vunpack.c.h.b16 %v331
        %v414 = vunpack.c.l.b16 %v332
        %v415 = vunpack.c.h.b16 %v332
        %v416 = vunpack.c.l.b16 %v333
        %v417 = vunpack.c.h.b16 %v333
        %v418 = vunpack.c.l.b16 %v334
        %v419 = vunpack.c.h.b16 %v334
        %v420 = vunpack.c.l.b16 %v335
        %v421 = vunpack.c.h.b16 %v335
        %v422 = vunpack.c.l.b16 %v336
        %v423 = vunpack.c.h.b16 %v336
        %v424 = vunpack.c.l.b16 %v337
        %v425 = vunpack.c.h.b16 %v337
        %v426 = vunpack.c.l.b16 %v338
        %v427 = vunpack.c.h.b16 %v338
        %v428 = vunpack.c.l.b16 %v339
        %v429 = vunpack.c.h.b16 %v339
        %v430 = vunpack.c.l.b16 %v340
        %v431 = vunpack.c.h.b16 %v340
        %v432 = vunpack.c.l.b16 %v341
        %v433 = vunpack.c.h.b16 %v341
        %v434 = vunpack.c.l.b16 %v342
        %v435 = vunpack.c.h.b16 %v342
        %v436 = vunpack.c.l.b16 %v343
        %v437 = vunpack.c.h.b16 %v343
        %v438 = vunpack.c.l.b16 %v344
        %v439 = vunpack.c.h.b16 %v344
        %v440 = vunpack.c.l.b16 %v345
        %v441 = vunpack.c.h.b16 %v345
        %v442 = vunpack.c.l.b16 %v346
        %v443 = vunpack.c.h.b16 %v346
        %v444 = vunpack.c.l.b16 %v347
        %v445 = vunpack.c.h.b16 %v347
        %v446 = vunpack.c.l.b16 %v348
        %v447 = vunpack.c.h.b16 %v348
        %v448 = vunpack.c.l.b16 %v349
        %v449 = vunpack.c.h.b16 %v349
        %v450 = vunpack.c.l.b16 %v350
        %v451 = vunpack.c.h.b16 %v350
        %v452 = vunpack.c.l.b16 %v351
        %v453 = vunpack.c.h.b16 %v351
        %v454 = vunpack.c.l.b16 %v352
        %v455 = vunpack.c.h.b16 %v352
        %v456 = vunpack.c.l.b16 %v353
        %v457 = vunpack.c.h.b16 %v353
        %v458 = vunpack.c.l.b16 %v354
        %v459 = vunpack.c.h.b16 %v354
        %v460 = vunpack.c.l.b16 %v355
        %v461 = vunpack.c.h.b16 %v355
        %v462 = vunpack.c.l.b16 %v356
        %v463 = vunpack.c.h.b16 %v356
        %v464 = vunpack.c.l.b16 %v357
        %v465 = vunpack.c.h.b16 %v357
        %v466 = vpack.c.b16 %v404, %v402
        %v467 = vpack.c.b16 %v405, %v403
        %v468 = vpack.c.b16 %v408, %v406
        %v469 = vpack.c.b16 %v409, %v407
        %v470 = vpack.c.b16 %v412, %v410
        %v471 = vpack.c.b16 %v413, %v411
        %v472 = vpack.c.b16 %v416, %v414
        %v473 = vpack.c.b16 %v417, %v415
        %v474 = vpack.c.b16 %v420, %v418
        %v475 = vpack.c.b16 %v421, %v419
        %v476 = vpack.c.b16 %v424, %v422
        %v477 = vpack.c.b16 %v425, %v423
        %v478 = vpack.c.b16 %v428, %v426
        %v479 = vpack.c.b16 %v429, %v427
        %v480 = vpack.c.b16 %v432, %v430
        %v481 = vpack.c.b16 %v433, %v431
        %v482 = vpack.c.b16 %v436, %v434
        %v483 = vpack.c.b16 %v437, %v435
        %v484 = vpack.c.b16 %v440, %v438
        %v485 = vpack.c.b16 %v441, %v439
        %v486 = vpack.c.b16 %v444, %v442
        %v487 = vpack.c.b16 %v445, %v443
        %v488 = vpack.c.b16 %v448, %v446
        %v489 = vpack.c.b16 %v449, %v447
        %v490 = vpack.c.b16 %v452, %v450
        %v491 = vpack.c.b16 %v453, %v451
        %v492 = vpack.c.b16 %v456, %v454
        %v493 = vpack.c.b16 %v457, %v455
        %v494 = vpack.c.b16 %v460, %v458
        %v495 = vpack.c.b16 %v461, %v459
        %v496 = vpack.c.b16 %v464, %v462
        %v497 = vpack.c.b16 %v465, %v463
        %530 = vmatprep.subr.bf16.mxu0 %v481
        %531 = vmatpush1.bf16.msra.mxu0 %v480
        %532 = vmatprep.subr.bf16.mxu0 %v479
        %533 = vmatpush1.bf16.msra.mxu0 %v478
        %534 = vmatprep.subr.bf16.mxu0 %v477
        %535 = vmatpush1.bf16.msra.mxu0 %v476
        %536 = vmatprep.subr.bf16.mxu0 %v475
        %537 = vmatpush1.bf16.msra.mxu0 %v474
        %538 = vmatprep.subr.bf16.mxu0 %v473
        %539 = vmatpush1.bf16.msra.mxu0 %v472
        %540 = vmatprep.subr.bf16.mxu0 %v471
        %541 = vmatpush1.bf16.msra.mxu0 %v470
        %542 = vmatprep.subr.bf16.mxu0 %v469
        %543 = vmatpush1.bf16.msra.mxu0 %v468
        %544 = vmatprep.subr.bf16.mxu0 %v467
        %545 = vmatpush1.bf16.msra.mxu0 %v466
        %546 = vmatprep.subr.bf16.mxu0 %v497
        %547 = vmatpush2.bf16.msra.mxu0 %v496
        %548 = vmatprep.subr.bf16.mxu0 %v495
        %549 = vmatpush2.bf16.msra.mxu0 %v494
        %550 = vmatprep.subr.bf16.mxu0 %v493
        %551 = vmatpush2.bf16.msra.mxu0 %v492
        %552 = vmatprep.subr.bf16.mxu0 %v491
        %553 = vmatpush2.bf16.msra.mxu0 %v490
        %554 = vmatprep.subr.bf16.mxu0 %v489
        %555 = vmatpush2.bf16.msra.mxu0 %v488
        %556 = vmatprep.subr.bf16.mxu0 %v487
        %557 = vmatpush2.bf16.msra.mxu0 %v486
        %558 = vmatprep.subr.bf16.mxu0 %v485
        %559 = vmatpush2.bf16.msra.mxu0 %v484
        %560 = vmatprep.subr.bf16.mxu0 %v483
        %561 = vmatpush2.bf16.msra.mxu0 %v482
        %562 = vmatprep.mubr.bf16.mxu0 %v311
        %563 = vmatmul.mubr.bf16.gmra.mxu0 %v310
        %v564 = vpop.f32.mrf.mxu0
        %v565 = vadd.f32 %v363, %v564
        %v566 = vpop.f32.mrf.mxu0
        %v567 = vadd.f32 %v367, %v566
        %v568 = vpop.f32.mrf.mxu0
        %v569 = vadd.f32 %v363, %v568
        %v570 = vpop.f32.mrf.mxu0
        %v571 = vadd.f32 %v367, %v570
        %572 = vmatprep.mubr.bf16.mxu0 %v313
        %573 = vmatmul.mubr.bf16.gmra.mxu0 %v312
        %v574 = vpop.f32.mrf.mxu0
        %v575 = vadd.f32 %v363, %v574
        %v576 = vpop.f32.mrf.mxu0
        %v577 = vadd.f32 %v367, %v576
        %v578 = vpop.f32.mrf.mxu0
        %v579 = vadd.f32 %v363, %v578
        %v580 = vpop.f32.mrf.mxu0
        %v581 = vadd.f32 %v367, %v580
        %582 = vmatprep.mubr.bf16.mxu0 %v315
        %583 = vmatmul.mubr.bf16.gmra.mxu0 %v314
        %v584 = vpop.f32.mrf.mxu0
        %v585 = vadd.f32 %v363, %v584
        %v586 = vpop.f32.mrf.mxu0
        %v587 = vadd.f32 %v367, %v586
        %v588 = vpop.f32.mrf.mxu0
        %v589 = vadd.f32 %v363, %v588
        %v590 = vpop.f32.mrf.mxu0
        %v591 = vadd.f32 %v367, %v590
        %592 = vmatprep.mubr.bf16.mxu0 %v317
        %593 = vmatmul.mubr.bf16.gmra.mxu0 %v316
        %v594 = vpop.f32.mrf.mxu0
        %v595 = vadd.f32 %v363, %v594
        %v596 = vpop.f32.mrf.mxu0
        %v597 = vadd.f32 %v367, %v596
        %v598 = vpop.f32.mrf.mxu0
        %v599 = vadd.f32 %v363, %v598
        %v600 = vpop.f32.mrf.mxu0
        %v601 = vadd.f32 %v367, %v600
        %602 = vmatprep.mubr.bf16.mxu0 %v319
        %603 = vmatmul.mubr.bf16.gmra.mxu0 %v318
        %v604 = vpop.f32.mrf.mxu0
        %v605 = vadd.f32 %v363, %v604
        %v606 = vpop.f32.mrf.mxu0
        %v607 = vadd.f32 %v367, %v606
        %v608 = vpop.f32.mrf.mxu0
        %v609 = vadd.f32 %v363, %v608
        %v610 = vpop.f32.mrf.mxu0
        %v611 = vadd.f32 %v367, %v610
        %612 = vmatprep.mubr.bf16.mxu0 %v321
        %613 = vmatmul.mubr.bf16.gmra.mxu0 %v320
        %v614 = vpop.f32.mrf.mxu0
        %v615 = vadd.f32 %v363, %v614
        %v616 = vpop.f32.mrf.mxu0
        %v617 = vadd.f32 %v367, %v616
        %v618 = vpop.f32.mrf.mxu0
        %v619 = vadd.f32 %v363, %v618
        %v620 = vpop.f32.mrf.mxu0
        %v621 = vadd.f32 %v367, %v620
        %622 = vmatprep.mubr.bf16.mxu0 %v323
        %623 = vmatmul.mubr.bf16.gmra.mxu0 %v322
        %v624 = vpop.f32.mrf.mxu0
        %v625 = vadd.f32 %v363, %v624
        %v626 = vpop.f32.mrf.mxu0
        %v627 = vadd.f32 %v367, %v626
        %v628 = vpop.f32.mrf.mxu0
        %v629 = vadd.f32 %v363, %v628
        %v630 = vpop.f32.mrf.mxu0
        %v631 = vadd.f32 %v367, %v630
        %632 = vmatprep.mubr.bf16.mxu0 %v325
        %633 = vmatmul.mubr.bf16.gmra.mxu0 %v324
        %v634 = vpop.f32.mrf.mxu0
        %v635 = vadd.f32 %v363, %v634
        %v636 = vpop.f32.mrf.mxu0
        %v637 = vadd.f32 %v367, %v636
        %v638 = vpop.f32.mrf.mxu0
        %v639 = vadd.f32 %v363, %v638
        %v640 = vpop.f32.mrf.mxu0
        %v641 = vadd.f32 %v367, %v640
        %642 = vdwg.mxu0
        %v643 = vtanh.pop %v565
        %v644 = vtanh.pop %v569
        %v645 = vtanh.pop %v575
        %v646 = vtanh.pop %v579
        %v647 = vtanh.pop %v585
        %v648 = vtanh.pop %v589
        %v649 = vtanh.pop %v595
        %v650 = vtanh.pop %v599
        %v651 = vtanh.pop %v605
        %v652 = vtanh.pop %v609
        %v653 = vtanh.pop %v615
        %v654 = vtanh.pop %v619
        %v655 = vtanh.pop %v625
        %v656 = vtanh.pop %v629
        %v657 = vtanh.pop %v635
        %v658 = vtanh.pop %v639
        %v659 = vxor.u32 %v567, 2147483648
        %v660 = vxor.u32 %v571, 2147483648
        %v661 = vxor.u32 %v577, 2147483648
        %v662 = vxor.u32 %v581, 2147483648
        %v663 = vxor.u32 %v587, 2147483648
        %v664 = vxor.u32 %v591, 2147483648
        %v665 = vxor.u32 %v597, 2147483648
        %v666 = vxor.u32 %v601, 2147483648
        %v667 = vxor.u32 %v607, 2147483648
        %v668 = vxor.u32 %v611, 2147483648
        %v669 = vxor.u32 %v617, 2147483648
        %v670 = vxor.u32 %v621, 2147483648
        %v671 = vxor.u32 %v627, 2147483648
        %v672 = vxor.u32 %v631, 2147483648
        %v673 = vxor.u32 %v637, 2147483648
        %v674 = vxor.u32 %v641, 2147483648
        %v675 = vmul.f32 %v659, 1.442695
        %v676 = vpow.pop %v675
        %v677 = vmul.f32 %v660, 1.442695
        %v678 = vpow.pop %v677
        %v679 = vmul.f32 %v661, 1.442695
        %v680 = vpow.pop %v679
        %v681 = vmul.f32 %v662, 1.442695
        %v682 = vpow.pop %v681
        %v683 = vmul.f32 %v663, 1.442695
        %v684 = vpow.pop %v683
        %v685 = vmul.f32 %v664, 1.442695
        %v686 = vpow.pop %v685
        %v687 = vmul.f32 %v665, 1.442695
        %v688 = vpow.pop %v687
        %v689 = vmul.f32 %v666, 1.442695
        %v690 = vpow.pop %v689
        %v691 = vmul.f32 %v667, 1.442695
        %v692 = vpow.pop %v691
        %v693 = vmul.f32 %v668, 1.442695
        %v694 = vpow.pop %v693
        %v695 = vmul.f32 %v669, 1.442695
        %v696 = vpow.pop %v695
        %v697 = vmul.f32 %v670, 1.442695
        %v698 = vpow.pop %v697
        %v699 = vmul.f32 %v671, 1.442695
        %v700 = vpow.pop %v699
        %v701 = vmul.f32 %v672, 1.442695
        %v702 = vpow.pop %v701
        %v703 = vmul.f32 %v673, 1.442695
        %v704 = vpow.pop %v703
        %v705 = vmul.f32 %v674, 1.442695
        %v706 = vpow.pop %v705
        %v707 = vadd.f32 %v676, 1.0
        %v708 = vadd.f32 %v678, 1.0
        %v709 = vadd.f32 %v680, 1.0
        %v710 = vadd.f32 %v682, 1.0
        %v711 = vadd.f32 %v684, 1.0
        %v712 = vadd.f32 %v686, 1.0
        %v713 = vadd.f32 %v688, 1.0
        %v714 = vadd.f32 %v690, 1.0
        %v715 = vadd.f32 %v692, 1.0
        %v716 = vadd.f32 %v694, 1.0
        %v717 = vadd.f32 %v696, 1.0
        %v718 = vadd.f32 %v698, 1.0
        %v719 = vadd.f32 %v700, 1.0
        %v720 = vadd.f32 %v702, 1.0
        %v721 = vadd.f32 %v704, 1.0
        %v722 = vadd.f32 %v706, 1.0
        %v723 = vrcp.pop %v707
        %v724 = vmul.f32 1.0, %v723
        %v725 = vrcp.pop %v708
        %v726 = vmul.f32 1.0, %v725
        %v727 = vrcp.pop %v709
        %v728 = vmul.f32 1.0, %v727
        %v729 = vrcp.pop %v710
        %v730 = vmul.f32 1.0, %v729
        %v731 = vrcp.pop %v711
        %v732 = vmul.f32 1.0, %v731
        %v733 = vrcp.pop %v712
        %v734 = vmul.f32 1.0, %v733
        %v735 = vrcp.pop %v713
        %v736 = vmul.f32 1.0, %v735
        %v737 = vrcp.pop %v714
        %v738 = vmul.f32 1.0, %v737
        %v739 = vrcp.pop %v715
        %v740 = vmul.f32 1.0, %v739
        %v741 = vrcp.pop %v716
        %v742 = vmul.f32 1.0, %v741
        %v743 = vrcp.pop %v717
        %v744 = vmul.f32 1.0, %v743
        %v745 = vrcp.pop %v718
        %v746 = vmul.f32 1.0, %v745
        %v747 = vrcp.pop %v719
        %v748 = vmul.f32 1.0, %v747
        %v749 = vrcp.pop %v720
        %v750 = vmul.f32 1.0, %v749
        %v751 = vrcp.pop %v721
        %v752 = vmul.f32 1.0, %v751
        %v753 = vrcp.pop %v722
        %v754 = vmul.f32 1.0, %v753
        %v755 = vmul.f32 %v643, %v724
        %v756 = vmul.f32 %v644, %v726
        %v757 = vmul.f32 %v645, %v728
        %v758 = vmul.f32 %v646, %v730
        %v759 = vmul.f32 %v647, %v732
        %v760 = vmul.f32 %v648, %v734
        %v761 = vmul.f32 %v649, %v736
        %v762 = vmul.f32 %v650, %v738
        %v763 = vmul.f32 %v651, %v740
        %v764 = vmul.f32 %v652, %v742
        %v765 = vmul.f32 %v653, %v744
        %v766 = vmul.f32 %v654, %v746
        %v767 = vmul.f32 %v655, %v748
        %v768 = vmul.f32 %v656, %v750
        %v769 = vmul.f32 %v657, %v752
        %v770 = vmul.f32 %v658, %v754
        %v771 = vpack.c.bf16 %v756, %v755
        %v772 = vpack.c.bf16 %v758, %v757
        %v773 = vpack.c.bf16 %v760, %v759
        %v774 = vpack.c.bf16 %v762, %v761
        %v775 = vpack.c.bf16 %v764, %v763
        %v776 = vpack.c.bf16 %v766, %v765
        %v777 = vpack.c.bf16 %v768, %v767
        %v778 = vpack.c.bf16 %v770, %v769
        %v779 = vld [vmem:[#allocation6] sm:$0xf]
        %v780 = vld [vmem:[#allocation6 + $0x4] sm:$0xf]
        %v781 = vld [vmem:[#allocation6 + $0x8] sm:$0xf]
        %v782 = vld [vmem:[#allocation6 + $0xc] sm:$0xf]
        %v783 = vld [vmem:[#allocation6 + $0x10] sm:$0xf]
        %v784 = vld [vmem:[#allocation6 + $0x14] sm:$0xf]
        %v785 = vld [vmem:[#allocation6 + $0x18] sm:$0xf]
        %v786 = vld [vmem:[#allocation6 + $0x1c] sm:$0xf]
        %v787 = vld [vmem:[#allocation6 + $0x20] sm:$0xf]
        %v788 = vld [vmem:[#allocation6 + $0x24] sm:$0xf]
        %v789 = vld [vmem:[#allocation6 + $0x28] sm:$0xf]
        %v790 = vld [vmem:[#allocation6 + $0x2c] sm:$0xf]
        %v791 = vld [vmem:[#allocation6 + $0x30] sm:$0xf]
        %v792 = vld [vmem:[#allocation6 + $0x34] sm:$0xf]
        %v793 = vld [vmem:[#allocation6 + $0x38] sm:$0xf]
        %v794 = vld [vmem:[#allocation6 + $0x3c] sm:$0xf]
        %v795 = vld [vmem:[%s4] sm:$0x1]
        %v797 = vlaneseq
        %v798 = vshrl.u32 %v797, 7
        %v799 = vsub.s32 0, %v798
        %v800 = vrot.slane %v795, %v799
        %v818 = vunpack.c.l.b16 %v779
        %v819 = vunpack.c.l.b16 %v780
        %v820 = vunpack.c.l.b16 %v781
        %v821 = vunpack.c.l.b16 %v782
        %v822 = vunpack.c.l.b16 %v783
        %v823 = vunpack.c.l.b16 %v784
        %v824 = vunpack.c.l.b16 %v785
        %v825 = vunpack.c.l.b16 %v786
        %v826 = vunpack.c.l.b16 %v787
        %v827 = vunpack.c.l.b16 %v788
        %v828 = vunpack.c.l.b16 %v789
        %v829 = vunpack.c.l.b16 %v790
        %v830 = vunpack.c.l.b16 %v791
        %v831 = vunpack.c.l.b16 %v792
        %v832 = vunpack.c.l.b16 %v793
        %v833 = vunpack.c.l.b16 %v794
        %v834 = vpack.c.b16 %v819, %v818
        %v835 = vpack.c.b16 %v821, %v820
        %v836 = vpack.c.b16 %v823, %v822
        %v837 = vpack.c.b16 %v825, %v824
        %v838 = vpack.c.b16 %v827, %v826
        %v839 = vpack.c.b16 %v829, %v828
        %v840 = vpack.c.b16 %v831, %v830
        %v841 = vpack.c.b16 %v833, %v832
        %850 = vmatprep.subr.bf16.mxu0 0
        %851 = vmatpush1.bf16.msra.mxu0 %v841
        %852 = vmatprep.subr.bf16.mxu0 0
        %853 = vmatpush1.bf16.msra.mxu0 %v840
        %854 = vmatprep.subr.bf16.mxu0 0
        %855 = vmatpush1.bf16.msra.mxu0 %v839
        %856 = vmatprep.subr.bf16.mxu0 0
        %857 = vmatpush1.bf16.msra.mxu0 %v838
        %858 = vmatprep.subr.bf16.mxu0 0
        %859 = vmatpush1.bf16.msra.mxu0 %v837
        %860 = vmatprep.subr.bf16.mxu0 0
        %861 = vmatpush1.bf16.msra.mxu0 %v836
        %862 = vmatprep.subr.bf16.mxu0 0
        %863 = vmatpush1.bf16.msra.mxu0 %v835
        %864 = vmatprep.subr.bf16.mxu0 0
        %865 = vmatpush1.bf16.msra.mxu0 %v834
        %866 = vmatprep.subr.bf16.mxu0 0
        %867 = vmatpush2.bf16.msra.mxu0 0
        %868 = vmatprep.subr.bf16.mxu0 0
        %869 = vmatpush2.bf16.msra.mxu0 0
        %870 = vmatprep.subr.bf16.mxu0 0
        %871 = vmatpush2.bf16.msra.mxu0 0
        %872 = vmatprep.subr.bf16.mxu0 0
        %873 = vmatpush2.bf16.msra.mxu0 0
        %874 = vmatprep.subr.bf16.mxu0 0
        %875 = vmatpush2.bf16.msra.mxu0 0
        %876 = vmatprep.subr.bf16.mxu0 0
        %877 = vmatpush2.bf16.msra.mxu0 0
        %878 = vmatprep.subr.bf16.mxu0 0
        %879 = vmatpush2.bf16.msra.mxu0 0
        %880 = vmatprep.subr.bf16.mxu0 0
        %881 = vmatpush2.bf16.msra.mxu0 0
        %882 = vmatprep.mubr.bf16.mxu0 0
        %883 = vmatmul.mubr.bf16.gmra.mxu0 %v771
        %v884 = vpop.f32.mrf.mxu0
        %v885 = vadd.f32 %v800, %v884
        %v886 = vpop.f32.mrf.mxu0
        %v887 = vpop.f32.mrf.mxu0
        %v888 = vadd.f32 %v800, %v887
        %v889 = vpop.f32.mrf.mxu0
        %890 = vmatprep.mubr.bf16.mxu0 0
        %891 = vmatmul.mubr.bf16.gmra.mxu0 %v772
        %v892 = vpop.f32.mrf.mxu0
        %v893 = vadd.f32 %v800, %v892
        %v894 = vpop.f32.mrf.mxu0
        %v895 = vpop.f32.mrf.mxu0
        %v896 = vadd.f32 %v800, %v895
        %v897 = vpop.f32.mrf.mxu0
        %898 = vmatprep.mubr.bf16.mxu0 0
        %899 = vmatmul.mubr.bf16.gmra.mxu0 %v773
        %v900 = vpop.f32.mrf.mxu0
        %v901 = vadd.f32 %v800, %v900
        %v902 = vpop.f32.mrf.mxu0
        %v903 = vpop.f32.mrf.mxu0
        %v904 = vadd.f32 %v800, %v903
        %v905 = vpop.f32.mrf.mxu0
        %906 = vmatprep.mubr.bf16.mxu0 0
        %907 = vmatmul.mubr.bf16.gmra.mxu0 %v774
        %v908 = vpop.f32.mrf.mxu0
        %v909 = vadd.f32 %v800, %v908
        %v910 = vpop.f32.mrf.mxu0
        %v911 = vpop.f32.mrf.mxu0
        %v912 = vadd.f32 %v800, %v911
        %v913 = vpop.f32.mrf.mxu0
        %914 = vmatprep.mubr.bf16.mxu0 0
        %915 = vmatmul.mubr.bf16.gmra.mxu0 %v775
        %v916 = vpop.f32.mrf.mxu0
        %v917 = vadd.f32 %v800, %v916
        %v918 = vpop.f32.mrf.mxu0
        %v919 = vpop.f32.mrf.mxu0
        %v920 = vadd.f32 %v800, %v919
        %v921 = vpop.f32.mrf.mxu0
        %922 = vmatprep.mubr.bf16.mxu0 0
        %923 = vmatmul.mubr.bf16.gmra.mxu0 %v776
        %v924 = vpop.f32.mrf.mxu0
        %v925 = vadd.f32 %v800, %v924
        %v926 = vpop.f32.mrf.mxu0
        %v927 = vpop.f32.mrf.mxu0
        %v928 = vadd.f32 %v800, %v927
        %v929 = vpop.f32.mrf.mxu0
        %930 = vmatprep.mubr.bf16.mxu0 0
        %931 = vmatmul.mubr.bf16.gmra.mxu0 %v777
        %v932 = vpop.f32.mrf.mxu0
        %v933 = vadd.f32 %v800, %v932
        %v934 = vpop.f32.mrf.mxu0
        %v935 = vpop.f32.mrf.mxu0
        %v936 = vadd.f32 %v800, %v935
        %v937 = vpop.f32.mrf.mxu0
        %938 = vmatprep.mubr.bf16.mxu0 0
        %939 = vmatmul.mubr.bf16.gmra.mxu0 %v778
        %v940 = vpop.f32.mrf.mxu0
        %v941 = vadd.f32 %v800, %v940
        %v942 = vpop.f32.mrf.mxu0
        %v943 = vpop.f32.mrf.mxu0
        %v944 = vadd.f32 %v800, %v943
        %v945 = vpop.f32.mrf.mxu0
        %946 = vdwg.mxu0
        %vm947 = vcmask 7168
        %948 = vst.msk [vmem:[%s275] sm:$0xff] %vm947, %v885
        %949 = vst.msk [vmem:[%s275 + $0x8] sm:$0xff] %vm947, %v888
        %950 = vst.msk [vmem:[%s275 + $0x10] sm:$0xff] %vm947, %v893
        %951 = vst.msk [vmem:[%s275 + $0x18] sm:$0xff] %vm947, %v896
        %952 = vst.msk [vmem:[%s275 + $0x20] sm:$0xff] %vm947, %v901
        %953 = vst.msk [vmem:[%s275 + $0x28] sm:$0xff] %vm947, %v904
        %954 = vst.msk [vmem:[%s275 + $0x30] sm:$0xff] %vm947, %v909
        %955 = vst.msk [vmem:[%s275 + $0x38] sm:$0xff] %vm947, %v912
        %956 = vst.msk [vmem:[%s275 + $0x40] sm:$0xff] %vm947, %v917
        %957 = vst.msk [vmem:[%s275 + $0x48] sm:$0xff] %vm947, %v920
        %958 = vst.msk [vmem:[%s275 + $0x50] sm:$0xff] %vm947, %v925
        %959 = vst.msk [vmem:[%s275 + $0x58] sm:$0xff] %vm947, %v928
        %960 = vst.msk [vmem:[%s275 + $0x60] sm:$0xff] %vm947, %v933
        %961 = vst.msk [vmem:[%s275 + $0x68] sm:$0xff] %vm947, %v936
        %962 = vst.msk [vmem:[%s275 + $0x70] sm:$0xff] %vm947, %v941
        %963 = vst.msk [vmem:[%s275 + $0x78] sm:$0xff] %vm947, %v944
        %s964 = smul.u32 16, %s20
        %p965 = scmp.lt.s32.totalorder %s964, 63
        %s966 = scalar_select %p965, %s964, 63
        %s967 = smul.addr %s966, 8
        %s968 = scalar_lea.vmem %s5, %s967
        // Predicated region
        $region53: #{tpu_custom_call.1} parent=39 // pred_check
          %p969 = pneg %p148
        $region54: #{tpu_custom_call.1} parent=39 // pred_check_branch
          %971 = sbr.rel (%p969) target = $region56
        $region55: #{tpu_custom_call.1} parent=39 // pred_region
          %s972 = smul.u32 16, %s20
        $region56: #{tpu_custom_call.1} parent=39 // pred_fallthru
          _
      $region40: #{tpu_custom_call.1} parent=5 // pred_fallthru
        _
      %p973 = scmp.le.s32.totalorder 2, %s15
      // Predicated region
      $region57: #{tpu_custom_call.1} parent=5 // pred_check
        %p974 = pneg %p973
      $region58: #{tpu_custom_call.1} parent=5 // pred_check_branch
        %976 = sbr.rel (%p974) target = $region60
      $region59: #{tpu_custom_call.1} parent=5 // pred_region
        %s977 = ssub.s32 %s15, 2
        // Predicated region
        $region61: #{tpu_custom_call.1} parent=59 // pred_check
          %p978 = pneg %p154
        $region62: #{tpu_custom_call.1} parent=59 // pred_check_branch
          %980 = sbr.rel (%p978) target = $region64
        $region63: #{tpu_custom_call.1} parent=59 // pred_region
          %s981 = smul.u32 16, %s21
          %p982 = scmp.lt.s32.totalorder %s981, 63
          %s983 = scalar_select %p982, %s981, 63
          %s984 = smul.addr %s983, 8
          %s985 = scalar_lea.vmem %s5, %s984
        $region64: #{tpu_custom_call.1} parent=59 // pred_fallthru
          _
      $region60: #{tpu_custom_call.1} parent=5 // pred_fallthru
        _
    $region6: #{tpu_custom_call.1} parent=1 // loop_footer
      %s19 = sadd.s32 1, %s15
    $region7: #{tpu_custom_call.1} parent=1 // loop_footer_branch
      %14 = sbr.rel target = $region3
    $region8: #{tpu_custom_call.1} parent=1 // loop_exit
      _
    %986 = vsyncpa [#allocation3], 1
    %s987 = scalar_lea.sflag [#allocation3], 1
    %988 = vsyncpa %s987, 1
    %989 = vsyncpa [#allocation5], 1

</llo_original>
